<compile_context>
chip_gen: v7x
topology: tpu7x:2x2x1
jax: 0.10.0
libtpu: 0.0.40
codegen_flags: <defaults>
</compile_context>

<pallas_src>
import functools

import jax
import jax.numpy as jnp
from jax import lax
from jax.experimental import pallas as pl
from jax.experimental.pallas import tpu as pltpu


VMEM_LIMIT_BYTES = 32 * 1024 * 1024  # explicit scoped-VMEM budget, safe on v5e/v6e/v7x


# ----------------------------------------------------------------------------
# Tiling helpers
# ----------------------------------------------------------------------------
def _round_up(x, m):
    return ((x + m - 1) // m) * m


def _tiles_for(n):
    """(row tile tm, contraction tile tk) for the (N, N) propagation operand."""
    if n >= 1024:
        return 512, 1024
    tk = _round_up(max(n, 1), 128)
    tm = 256 if tk % 256 == 0 else 128
    return tm, tk


def _padded_num_nodes(n):
    _, tk = _tiles_for(n)
    return _round_up(n, tk)


# ----------------------------------------------------------------------------
# Propagation kernels:  tiled  A_hat @ x  with fused epilogues
# ----------------------------------------------------------------------------
def _prop_bias_relu_kernel(a_ref, x_ref, b_ref, o_ref, acc_ref):
    """out = relu(A_hat @ x + bias)   (GCNConv aggregation + bias + activation)."""
    k = pl.program_id(1)

    @pl.when(k == 0)
    def _():
        acc_ref[...] = jnp.zeros_like(acc_ref)

    acc_ref[...] += jnp.dot(a_ref[...], x_ref[...].astype(jnp.bfloat16),
                            preferred_element_type=jnp.float32)

    @pl.when(k == pl.num_programs(1) - 1)
    def _():
        o_ref[...] = jnp.maximum(acc_ref[...] + b_ref[...], 0.0).astype(o_ref.dtype)


def _prop_appnp_kernel(alpha, a_ref, x_ref, h_ref, o_ref, acc_ref):
    """out = (1 - alpha) * (A_hat @ x) + alpha * h   (one APPNP power iteration)."""
    k = pl.program_id(1)

    @pl.when(k == 0)
    def _():
        acc_ref[...] = jnp.zeros_like(acc_ref)

    acc_ref[...] += jnp.dot(a_ref[...], x_ref[...].astype(jnp.bfloat16),
                            preferred_element_type=jnp.float32)

    @pl.when(k == pl.num_programs(1) - 1)
    def _():
        o_ref[...] = ((1.0 - alpha) * acc_ref[...]
                      + alpha * h_ref[...]).astype(o_ref.dtype)


def propagate_bias_relu(a_bf16, x, bias):
    """relu(A_hat @ x + bias).  a_bf16: (Np, Np) bf16, x: (Np, F) f32, bias: (F,)."""
    n = a_bf16.shape[0]
    f = x.shape[1]
    fp = _round_up(f, 128)                      # lane-dense RHS / output
    tm, tk = _tiles_for(n)
    assert n % tm == 0 and n % tk == 0
    xp = jnp.pad(x, ((0, 0), (0, fp - f)))
    bp = jnp.pad(bias, (0, fp - f)).reshape(1, fp)
    out = pl.pallas_call(
        _prop_bias_relu_kernel,
        out_shape=jax.ShapeDtypeStruct((n, fp), jnp.float32),
        grid_spec=pltpu.PrefetchScalarGridSpec(
            num_scalar_prefetch=0,
            grid=(n // tm, n // tk),
            in_specs=[
                pl.BlockSpec((tm, tk), lambda i, k: (i, k)),   # A_hat tile (bf16)
                pl.BlockSpec((tk, fp), lambda i, k: (k, 0)),   # RHS (contraction-indexed)
                pl.BlockSpec((1, fp), lambda i, k: (0, 0)),    # bias
            ],
            out_specs=pl.BlockSpec((tm, fp), lambda i, k: (i, 0)),
            scratch_shapes=[pltpu.VMEM((tm, fp), jnp.float32)],
        ),
        compiler_params=pltpu.CompilerParams(
            dimension_semantics=("parallel", "arbitrary"),
            vmem_limit_bytes=VMEM_LIMIT_BYTES,
        ),
    )(a_bf16, xp, bp)
    return out[:, :f]


def propagate_appnp_step(a_bf16, z, z0, alpha):
    """(1 - alpha) * A_hat @ z + alpha * z0  (one APPNP iteration)."""
    n = a_bf16.shape[0]
    f = z.shape[1]
    fp = _round_up(f, 128)
    tm, tk = _tiles_for(n)
    assert n % tm == 0 and n % tk == 0
    zp = jnp.pad(z, ((0, 0), (0, fp - f)))
    z0p = jnp.pad(z0, ((0, 0), (0, fp - f)))
    out = pl.pallas_call(
        functools.partial(_prop_appnp_kernel, float(alpha)),
        out_shape=jax.ShapeDtypeStruct((n, fp), jnp.float32),
        grid_spec=pltpu.PrefetchScalarGridSpec(
            num_scalar_prefetch=0,
            grid=(n // tm, n // tk),
            in_specs=[
                pl.BlockSpec((tm, tk), lambda i, k: (i, k)),   # A_hat tile (bf16)
                pl.BlockSpec((tk, fp), lambda i, k: (k, 0)),   # z (contraction-indexed)
                pl.BlockSpec((tm, fp), lambda i, k: (i, 0)),   # z0 residual (row-indexed)
            ],
            out_specs=pl.BlockSpec((tm, fp), lambda i, k: (i, 0)),
            scratch_shapes=[pltpu.VMEM((tm, fp), jnp.float32)],
        ),
        compiler_params=pltpu.CompilerParams(
            dimension_semantics=("parallel", "arbitrary"),
            vmem_limit_bytes=VMEM_LIMIT_BYTES,
        ),
    )(a_bf16, zp, z0p)
    return out[:, :f]


# ----------------------------------------------------------------------------
# Dense linear (+ optional ReLU) and row-wise log_softmax kernels
# ----------------------------------------------------------------------------
def _linear_kernel(apply_relu, x_ref, w_ref, b_ref, o_ref):
    y = jnp.dot(x_ref[...], w_ref[...], preferred_element_type=jnp.float32) + b_ref[...]
    if apply_relu:
        y = jnp.maximum(y, 0.0)
    o_ref[...] = y.astype(o_ref.dtype)


def linear(x, w, b, apply_relu=False):
    n, fin = x.shape
    fout = w.shape[1]
    tm, _ = _tiles_for(n)
    assert n % tm == 0
    return pl.pallas_call(
        functools.partial(_linear_kernel, apply_relu),
        out_shape=jax.ShapeDtypeStruct((n, fout), jnp.float32),
        grid_spec=pltpu.PrefetchScalarGridSpec(
            num_scalar_prefetch=0,
            grid=(n // tm,),
            in_specs=[
                pl.BlockSpec((tm, fin), lambda i: (i, 0)),
                pl.BlockSpec((fin, fout), lambda i: (0, 0)),
                pl.BlockSpec((1, fout), lambda i: (0, 0)),
            ],
            out_specs=pl.BlockSpec((tm, fout), lambda i: (i, 0)),
        ),
        compiler_params=pltpu.CompilerParams(
            dimension_semantics=("parallel",),
            vmem_limit_bytes=VMEM_LIMIT_BYTES,
        ),
    )(x, w, b.reshape(1, fout))


def _log_softmax_kernel(x_ref, o_ref):
    x = x_ref[...]
    m = jnp.max(x, axis=-1, keepdims=True)
    s = x - m
    lse = jnp.log(jnp.sum(jnp.exp(s), axis=-1, keepdims=True))
    o_ref[...] = (s - lse).astype(o_ref.dtype)


def log_softmax_rows(x):
    n, c = x.shape
    tm, _ = _tiles_for(n)
    assert n % tm == 0
    return pl.pallas_call(
        _log_softmax_kernel,
        out_shape=jax.ShapeDtypeStruct((n, c), jnp.float32),
        grid_spec=pltpu.PrefetchScalarGridSpec(
            num_scalar_prefetch=0,
            grid=(n // tm,),
            in_specs=[pl.BlockSpec((tm, c), lambda i: (i, 0))],
            out_specs=pl.BlockSpec((tm, c), lambda i: (i, 0)),
        ),
        compiler_params=pltpu.CompilerParams(
            dimension_semantics=("parallel",),
            vmem_limit_bytes=VMEM_LIMIT_BYTES,
        ),
    )(x)


# ----------------------------------------------------------------------------
# Graph glue (plain JAX): gcn_norm -> dense normalized adjacency
# ----------------------------------------------------------------------------
def gcn_norm_dense(edge_index, edge_weight, num_nodes):
    """Mirror of PyG gcn_norm (add self loops, symmetric normalization).
    Returns dense A_hat with A_hat[dst, src] = norm(src -> dst)."""
    row, col = edge_index[0], edge_index[1]
    if edge_weight is None:
        edge_weight = jnp.ones(row.shape, jnp.float32)
    loop = jnp.arange(num_nodes, dtype=row.dtype)
    row = jnp.concatenate([row, loop])
    col = jnp.concatenate([col, loop])
    ew = jnp.concatenate([edge_weight.astype(jnp.float32),
                          jnp.ones((num_nodes,), jnp.float32)])
    deg = jnp.zeros((num_nodes,), jnp.float32).at[col].add(ew)
    dinv = jnp.where(deg > 0, lax.rsqrt(deg), 0.0)
    norm = dinv[row] * ew * dinv[col]
    # source_to_target flow: aggregate at dst=col from src=row
    return jnp.zeros((num_nodes, num_nodes), jnp.float32).at[col, row].add(norm)


# ----------------------------------------------------------------------------
# Model: parameters, Pallas forward, pure-JAX reference
# ----------------------------------------------------------------------------
def init_params(key, features_num, hidden, num_class, num_layers):
    def dense_init(k, fan_in, fan_out):
        k1, k2 = jax.random.split(k)
        bound = 1.0 / (fan_in ** 0.5)
        w = jax.random.uniform(k1, (fan_in, fan_out), jnp.float32, -bound, bound)
        b = jax.random.uniform(k2, (fan_out,), jnp.float32, -bound, bound)
        return w, b

    keys = jax.random.split(key, 2 + num_layers)
    w1, b1 = dense_init(keys[0], features_num, hidden)
    w2, b2 = dense_init(keys[1], hidden, num_class)
    convs = []
    for i in range(num_layers):
        wc, bc = dense_init(keys[2 + i], hidden, hidden)
        convs.append((wc, bc))
    return {"w1": w1, "b1": b1, "convs": convs, "w2": w2, "b2": b2}


def gcn_appnp_forward(params, x_pad, a_bf16, *, K=5, alpha=0.2):
    """Inference forward on row-padded inputs (padded rows are harmless: A_hat's
    padded rows/cols are zero, so they never contaminate valid rows)."""
    h = linear(x_pad, params["w1"], params["b1"], apply_relu=True)
    # F.dropout(p=0.5) -> identity at inference
    for wc, bc in params["convs"]:
        t = linear(h, wc, jnp.zeros_like(bc), apply_relu=False)   # GCNConv.lin (no bias)
        h = propagate_bias_relu(a_bf16, t, bc)                    # relu(A_hat @ t + bias)
    # F.dropout(p=0.2) -> identity at inference
    z0 = linear(h, params["w2"], params["b2"], apply_relu=False)
    z = z0
    for _ in range(K):                                            # APPNP
        z = propagate_appnp_step(a_bf16, z, z0, alpha)
    return log_softmax_rows(z)


def gcn_appnp_reference(params, x, a_dense, *, K=5, alpha=0.2):
    """Pure-JAX reference mirroring the kernels' bf16 quantization of A_hat / RHS."""
    q = lambda v: v.astype(jnp.bfloat16).astype(jnp.float32)
    hp = lax.Precision.HIGHEST
    a_q = q(a_dense)
    h = jax.nn.relu(jnp.dot(x, params["w1"], precision=hp) + params["b1"])
    for wc, bc in params["convs"]:
        t = jnp.dot(h, wc, precision=hp)
        h = jax.nn.relu(jnp.dot(a_q, q(t), precision=hp) + bc)
    z0 = jnp.dot(h, params["w2"], precision=hp) + params["b2"]
    z = z0
    for _ in range(K):
        z = (1.0 - alpha) * jnp.dot(a_q, q(z), precision=hp) + alpha * z0
    return jax.nn.log_softmax(z, axis=-1)


# ----------------------------------------------------------------------------
if __name__ == "__main__":
    key = jax.random.PRNGKey(0)
    N, E = 64, 256
    features_num, hidden, num_class, num_layers = 16, 48, 2, 1
    K, alpha = 5, 0.2

    ks = jax.random.split(key, 8)
    src = jax.random.randint(ks[0], (E,), 0, N, dtype=jnp.int32)
    off = jax.random.randint(ks[1], (E,), 1, N, dtype=jnp.int32)
    dst = (src + off) % N                          # no self loops in the raw edge list
    edge_index = jnp.stack([src, dst], axis=0)
    edge_weight = jax.random.uniform(ks[2], (E,), jnp.float32, 0.1, 1.0)
    x = jax.random.normal(ks[3], (N, features_num), jnp.float32)

    params = init_params(ks[4], features_num, hidden, num_class, num_layers)

    # Graph -> dense normalized adjacency (JAX glue), then pad to tile multiples
    # and store the O(N^2) operand in bf16 for the Pallas propagation kernels.
    a_dense = gcn_norm_dense(edge_index, edge_weight, N)          # (N, N) f32
    n_pad = _padded_num_nodes(N)
    a_bf16 = jnp.pad(a_dense, ((0, n_pad - N), (0, n_pad - N))).astype(jnp.bfloat16)
    x_pad = jnp.pad(x, ((0, n_pad - N), (0, 0)))

    out = gcn_appnp_forward(params, x_pad, a_bf16, K=K, alpha=alpha)
    out = jax.block_until_ready(out)[:N]

    ref = gcn_appnp_reference(params, x, a_dense, K=K, alpha=alpha)
    assert out.shape == (N, num_class)
    max_err = float(jnp.max(jnp.abs(out - ref)))
    assert jnp.allclose(out, ref, atol=2e-3, rtol=2e-3), \
        f"mismatch vs reference (max abs err {max_err})"
    print("KERNEL_OK")
</pallas_src>

<mosaic_0001>
module attributes {stable_mosaic.version = 11 : i64} {
  func.func @_linear_kernel(%arg0: i32, %arg1: memref<128x16xf32, #tpu.memory_space<vmem>>, %arg2: memref<16x48xf32, #tpu.memory_space<vmem>>, %arg3: memref<1x48xf32, #tpu.memory_space<vmem>>, %arg4: memref<128x48xf32, #tpu.memory_space<vmem>>) attributes {dimension_semantics = [#tpu.dimension_semantics<parallel>], iteration_bounds = array<i64: 1>, scalar_prefetch = 0 : i64, scratch_operands = 0 : i64, tpu.core_type = #tpu.core_type<tc>, window_params = [{transform_indices = @transform_0, window_bounds = array<i64: 128, 16>}, {pipeline_mode = #tpu.pipeline_mode<synchronous>, transform_indices = @transform_1, window_bounds = array<i64: 16, 48>}, {pipeline_mode = #tpu.pipeline_mode<synchronous>, transform_indices = @transform_2, window_bounds = array<i64: 1, 48>}, {transform_indices = @transform_3, window_bounds = array<i64: 128, 48>}]} {
    %c0 = arith.constant 0 : index
    %c0_0 = arith.constant 0 : index
    %0 = vector.load %arg1[%c0, %c0_0] : memref<128x16xf32, #tpu.memory_space<vmem>>, vector<128x16xf32>
    %c0_1 = arith.constant 0 : index
    %c0_2 = arith.constant 0 : index
    %1 = vector.load %arg2[%c0_1, %c0_2] : memref<16x48xf32, #tpu.memory_space<vmem>>, vector<16x48xf32>
    %cst = arith.constant dense<0.000000e+00> : vector<128x48xf32>
    %2 = tpu.matmul %0, %1, %cst {dimension_numbers = #tpu.dot_dimension_numbers<[1], [0], [0], [1], [0, 0, 1, 1], [], []>} : vector<128x16xf32>, vector<16x48xf32>, vector<128x48xf32> -> vector<128x48xf32>
    %c0_3 = arith.constant 0 : index
    %c0_4 = arith.constant 0 : index
    %3 = vector.load %arg3[%c0_3, %c0_4] : memref<1x48xf32, #tpu.memory_space<vmem>>, vector<1x48xf32>
    %4 = vector.broadcast %3 : vector<1x48xf32> to vector<128x48xf32>
    %5 = arith.addf %2, %4 : vector<128x48xf32>
    %cst_5 = arith.constant 0.000000e+00 : f32
    %6 = vector.broadcast %cst_5 : f32 to vector<128x48xf32>
    %7 = arith.maximumf %5, %6 : vector<128x48xf32>
    %c0_6 = arith.constant 0 : index
    %c0_7 = arith.constant 0 : index
    %8 = vector.load %arg4[%c0_6, %c0_7] : memref<128x48xf32, #tpu.memory_space<vmem>>, vector<128x48xf32>
    tpu.vector_store %arg4[%c0_6, %c0_7], %7 {strides = array<i32>} : memref<128x48xf32, #tpu.memory_space<vmem>>, vector<128x48xf32>,
    return
  }
  func.func @transform_0(%arg0: i32) -> (i32, i32) {
    %c0_i32 = arith.constant 0 : i32
    %c0_i32_0 = arith.constant 0 : i32
    return %arg0, %c0_i32 : i32, i32
  }
  func.func @transform_1(%arg0: i32) -> (i32, i32) {
    %c0_i32 = arith.constant 0 : i32
    %c0_i32_0 = arith.constant 0 : i32
    %c0_i32_1 = arith.constant 0 : i32
    return %c0_i32, %c0_i32_0 : i32, i32
  }
  func.func @transform_2(%arg0: i32) -> (i32, i32) {
    %c0_i32 = arith.constant 0 : i32
    %c0_i32_0 = arith.constant 0 : i32
    %c0_i32_1 = arith.constant 0 : i32
    return %c0_i32, %c0_i32_0 : i32, i32
  }
  func.func @transform_3(%arg0: i32) -> (i32, i32) {
    %c0_i32 = arith.constant 0 : i32
    %c0_i32_0 = arith.constant 0 : i32
    return %arg0, %c0_i32 : i32, i32
  }
}

</mosaic_0001>

<llo_original>
// kernel: tpu_custom_call.1
$region0: #{tpu_custom_call.1}
  #allocation0 [shape = 'u32[]', space=smem, size = 0x4, offset = 0x4, fixed_abs, tag = 'smem constant byte address 0x4 - core index']
  #allocation1 [shape = 'u32[144,128]{1,0:T(1,128)}', space=vmem, size = 0x12000, scoped, tag = 'internal scratch']
  %s0 = inlined_call_operand.vmem [shape: f32[128,16], index: 0, kind: input, shape index: {}]
  %s1 = inlined_call_operand.vmem [shape: f32[16,48], index: 1, kind: input, shape index: {}]
  %s2 = inlined_call_operand.vmem [shape: f32[1,48], index: 2, kind: input, shape index: {}]
  %s3 = inlined_call_operand.vmem [shape: f32[128,48], index: 3, kind: output, shape index: {}]
  %s4 = sld [smem:[#allocation0]]
  $region22: #{tpu_custom_call.1} parent=0
    _
  %s6 = ssub.s32 1, %s4
  %s7 = scalar_select 0, %s6, %s4
  // Predicated region
  $region2: #{tpu_custom_call.1} parent=0 // pred_check
    _
  $region3: #{tpu_custom_call.1} parent=0 // pred_check_branch
    %9 = sbr.rel (0) target = $region5
  $region4: #{tpu_custom_call.1} parent=0 // pred_region
    _
  $region5: #{tpu_custom_call.1} parent=0 // pred_fallthru
    _
  // Predicated region
  $region6: #{tpu_custom_call.1} parent=0 // pred_check
    _
  $region7: #{tpu_custom_call.1} parent=0 // pred_check_branch
    %11 = sbr.rel (0) target = $region9
  $region8: #{tpu_custom_call.1} parent=0 // pred_region
    _
  $region9: #{tpu_custom_call.1} parent=0 // pred_fallthru
    _
  // Predicated region
  $region10: #{tpu_custom_call.1} parent=0 // pred_check
    _
  $region11: #{tpu_custom_call.1} parent=0 // pred_check_branch
    %13 = sbr.rel (0) target = $region13
  $region12: #{tpu_custom_call.1} parent=0 // pred_region
    _
  $region13: #{tpu_custom_call.1} parent=0 // pred_fallthru
    _
  %v14 = vld [vmem:[%s0] sm:$0xff]
  %v15 = vld [vmem:[%s0 + $0x8] sm:$0xff]
  %v16 = vld [vmem:[%s0 + $0x10] sm:$0xff]
  %v17 = vld [vmem:[%s0 + $0x18] sm:$0xff]
  %v18 = vld [vmem:[%s0 + $0x20] sm:$0xff]
  %v19 = vld [vmem:[%s0 + $0x28] sm:$0xff]
  %v20 = vld [vmem:[%s0 + $0x30] sm:$0xff]
  %v21 = vld [vmem:[%s0 + $0x38] sm:$0xff]
  %v22 = vld [vmem:[%s0 + $0x40] sm:$0xff]
  %v23 = vld [vmem:[%s0 + $0x48] sm:$0xff]
  %v24 = vld [vmem:[%s0 + $0x50] sm:$0xff]
  %v25 = vld [vmem:[%s0 + $0x58] sm:$0xff]
  %v26 = vld [vmem:[%s0 + $0x60] sm:$0xff]
  %v27 = vld [vmem:[%s0 + $0x68] sm:$0xff]
  %v28 = vld [vmem:[%s0 + $0x70] sm:$0xff]
  %v29 = vld [vmem:[%s0 + $0x78] sm:$0xff]
  %v30 = vld [vmem:[%s1] sm:$0xff]
  %v31 = vld [vmem:[%s1 + $0x8] sm:$0xff]
  %v32 = vld [vmem:[%s2] sm:$0x1]
  %v34 = vlaneseq
  %v35 = vshrl.u32 %v34, 7
  %v36 = vsub.s32 0, %v35
  %v37 = vrot.slane %v32, %v36
  %vm39 = vcmask 130048
  %v41 = vsel %vm39, %v14, 0
  %v44 = vsel %vm39, %v15, 0
  %v47 = vsel %vm39, %v16, 0
  %v50 = vsel %vm39, %v17, 0
  %v53 = vsel %vm39, %v18, 0
  %v56 = vsel %vm39, %v19, 0
  %v59 = vsel %vm39, %v20, 0
  %v62 = vsel %vm39, %v21, 0
  %v65 = vsel %vm39, %v22, 0
  %v68 = vsel %vm39, %v23, 0
  %v71 = vsel %vm39, %v24, 0
  %v74 = vsel %vm39, %v25, 0
  %v77 = vsel %vm39, %v26, 0
  %v80 = vsel %vm39, %v27, 0
  %v83 = vsel %vm39, %v28, 0
  %v86 = vsel %vm39, %v29, 0
  %88 = vmatprep.subr.mxu0 0.0
  %89 = vmatpush1.msra.mxu0 %v30
  %90 = vmatprep.subr.mxu0 0.0
  %91 = vmatpush1.msra.mxu0 %v31
  %92 = vmatprep.subr.mxu0 0.0
  %93 = vmatpush1.msra.mxu0 0.0
  %94 = vmatprep.subr.mxu0 0.0
  %95 = vmatpush1.msra.mxu0 0.0
  %96 = vmatprep.subr.mxu0 0.0
  %97 = vmatpush1.msra.mxu0 0.0
  %98 = vmatprep.subr.mxu0 0.0
  %99 = vmatpush1.msra.mxu0 0.0
  %100 = vmatprep.subr.mxu0 0.0
  %101 = vmatpush1.msra.mxu0 0.0
  %102 = vmatprep.subr.mxu0 0.0
  %103 = vmatpush1.msra.mxu0 0.0
  %104 = vmatprep.subr.mxu0 0.0
  %105 = vmatpush1.msra.mxu0 0.0
  %106 = vmatprep.subr.mxu0 0.0
  %107 = vmatpush1.msra.mxu0 0.0
  %108 = vmatprep.subr.mxu0 0.0
  %109 = vmatpush1.msra.mxu0 0.0
  %110 = vmatprep.subr.mxu0 0.0
  %111 = vmatpush1.msra.mxu0 0.0
  %112 = vmatprep.subr.mxu0 0.0
  %113 = vmatpush1.msra.mxu0 0.0
  %114 = vmatprep.subr.mxu0 0.0
  %115 = vmatpush1.msra.mxu0 0.0
  %116 = vmatprep.subr.mxu0 0.0
  %117 = vmatpush1.msra.mxu0 0.0
  %118 = vmatprep.subr.mxu0 0.0
  %119 = vmatpush1.msra.mxu0 0.0
  %120 = vmatprep.subr.mxu0 0.0
  %121 = vmatpush1.msra.mxu0 0.0
  %122 = vmatprep.subr.mxu0 0.0
  %123 = vmatpush1.msra.mxu0 0.0
  %124 = vmatprep.subr.mxu0 0.0
  %125 = vmatpush1.msra.mxu0 0.0
  %126 = vmatprep.subr.mxu0 0.0
  %127 = vmatpush1.msra.mxu0 0.0
  %128 = vmatprep.subr.mxu0 0.0
  %129 = vmatpush1.msra.mxu0 0.0
  %130 = vmatprep.subr.mxu0 0.0
  %131 = vmatpush1.msra.mxu0 0.0
  %132 = vmatprep.subr.mxu0 0.0
  %133 = vmatpush1.msra.mxu0 0.0
  %134 = vmatprep.subr.mxu0 0.0
  %135 = vmatpush1.msra.mxu0 0.0
  %136 = vmatprep.subr.mxu0 0.0
  %137 = vmatpush1.msra.mxu0 0.0
  %138 = vmatprep.subr.mxu0 0.0
  %139 = vmatpush1.msra.mxu0 0.0
  %140 = vmatprep.subr.mxu0 0.0
  %141 = vmatpush1.msra.mxu0 0.0
  %142 = vmatprep.subr.mxu0 0.0
  %143 = vmatpush1.msra.mxu0 0.0
  %144 = vmatprep.subr.mxu0 0.0
  %145 = vmatpush1.msra.mxu0 0.0
  %146 = vmatprep.subr.mxu0 0.0
  %147 = vmatpush1.msra.mxu0 0.0
  %148 = vmatprep.subr.mxu0 0.0
  %149 = vmatpush1.msra.mxu0 0.0
  %150 = vmatprep.subr.mxu0 0.0
  %151 = vmatpush1.msra.mxu0 0.0
  %152 = vmatprep.mubr.f32.mxu0 0.0
  %153 = vmatmul.mubr.f32.gmra.mrb[0].mxu0 %v41
  %v154 = vpop.f32.mrb[0].mxu0
  %v155 = vadd.f32 %v37, %v154
  %v156 = vpop.f32.mrb[0].mxu0
  %157 = vmatprep.mubr.f32.mxu0 0.0
  %158 = vmatmul.mubr.f32.gmra.mrb[0].mxu0 %v44
  %v159 = vpop.f32.mrb[0].mxu0
  %v160 = vadd.f32 %v37, %v159
  %v161 = vpop.f32.mrb[0].mxu0
  %162 = vmatprep.mubr.f32.mxu0 0.0
  %163 = vmatmul.mubr.f32.gmra.mrb[0].mxu0 %v47
  %v164 = vpop.f32.mrb[0].mxu0
  %v165 = vadd.f32 %v37, %v164
  %v166 = vpop.f32.mrb[0].mxu0
  %167 = vmatprep.mubr.f32.mxu0 0.0
  %168 = vmatmul.mubr.f32.gmra.mrb[0].mxu0 %v50
  %v169 = vpop.f32.mrb[0].mxu0
  %v170 = vadd.f32 %v37, %v169
  %v171 = vpop.f32.mrb[0].mxu0
  %172 = vmatprep.mubr.f32.mxu0 0.0
  %173 = vmatmul.mubr.f32.gmra.mrb[0].mxu0 %v53
  %v174 = vpop.f32.mrb[0].mxu0
  %v175 = vadd.f32 %v37, %v174
  %v176 = vpop.f32.mrb[0].mxu0
  %177 = vmatprep.mubr.f32.mxu0 0.0
  %178 = vmatmul.mubr.f32.gmra.mrb[0].mxu0 %v56
  %v179 = vpop.f32.mrb[0].mxu0
  %v180 = vadd.f32 %v37, %v179
  %v181 = vpop.f32.mrb[0].mxu0
  %182 = vmatprep.mubr.f32.mxu0 0.0
  %183 = vmatmul.mubr.f32.gmra.mrb[0].mxu0 %v59
  %v184 = vpop.f32.mrb[0].mxu0
  %v185 = vadd.f32 %v37, %v184
  %v186 = vpop.f32.mrb[0].mxu0
  %187 = vmatprep.mubr.f32.mxu0 0.0
  %188 = vmatmul.mubr.f32.gmra.mrb[0].mxu0 %v62
  %v189 = vpop.f32.mrb[0].mxu0
  %v190 = vadd.f32 %v37, %v189
  %v191 = vpop.f32.mrb[0].mxu0
  %192 = vmatprep.mubr.f32.mxu0 0.0
  %193 = vmatmul.mubr.f32.gmra.mrb[0].mxu0 %v65
  %v194 = vpop.f32.mrb[0].mxu0
  %v195 = vadd.f32 %v37, %v194
  %v196 = vpop.f32.mrb[0].mxu0
  %197 = vmatprep.mubr.f32.mxu0 0.0
  %198 = vmatmul.mubr.f32.gmra.mrb[0].mxu0 %v68
  %v199 = vpop.f32.mrb[0].mxu0
  %v200 = vadd.f32 %v37, %v199
  %v201 = vpop.f32.mrb[0].mxu0
  %202 = vmatprep.mubr.f32.mxu0 0.0
  %203 = vmatmul.mubr.f32.gmra.mrb[0].mxu0 %v71
  %v204 = vpop.f32.mrb[0].mxu0
  %v205 = vadd.f32 %v37, %v204
  %v206 = vpop.f32.mrb[0].mxu0
  %207 = vmatprep.mubr.f32.mxu0 0.0
  %208 = vmatmul.mubr.f32.gmra.mrb[0].mxu0 %v74
  %v209 = vpop.f32.mrb[0].mxu0
  %v210 = vadd.f32 %v37, %v209
  %v211 = vpop.f32.mrb[0].mxu0
  %212 = vmatprep.mubr.f32.mxu0 0.0
  %213 = vmatmul.mubr.f32.gmra.mrb[0].mxu0 %v77
  %v214 = vpop.f32.mrb[0].mxu0
  %v215 = vadd.f32 %v37, %v214
  %v216 = vpop.f32.mrb[0].mxu0
  %217 = vmatprep.mubr.f32.mxu0 0.0
  %218 = vmatmul.mubr.f32.gmra.mrb[0].mxu0 %v80
  %v219 = vpop.f32.mrb[0].mxu0
  %v220 = vadd.f32 %v37, %v219
  %v221 = vpop.f32.mrb[0].mxu0
  %222 = vmatprep.mubr.f32.mxu0 0.0
  %223 = vmatmul.mubr.f32.gmra.mrb[0].mxu0 %v83
  %v224 = vpop.f32.mrb[0].mxu0
  %v225 = vadd.f32 %v37, %v224
  %v226 = vpop.f32.mrb[0].mxu0
  %227 = vmatprep.mubr.f32.mxu0 0.0
  %228 = vmatmul.mubr.f32.gmra.mrb[0].mxu0 %v86
  %v229 = vpop.f32.mrb[0].mxu0
  %v230 = vadd.f32 %v37, %v229
  %v231 = vpop.f32.mrb[0].mxu0
  %232 = vdwg.mxu0
  %v233 = vmax.f32 %v155, 0.0
  %v234 = vmax.f32 %v160, 0.0
  %v235 = vmax.f32 %v165, 0.0
  %v236 = vmax.f32 %v170, 0.0
  %v237 = vmax.f32 %v175, 0.0
  %v238 = vmax.f32 %v180, 0.0
  %v239 = vmax.f32 %v185, 0.0
  %v240 = vmax.f32 %v190, 0.0
  %v241 = vmax.f32 %v195, 0.0
  %v242 = vmax.f32 %v200, 0.0
  %v243 = vmax.f32 %v205, 0.0
  %v244 = vmax.f32 %v210, 0.0
  %v245 = vmax.f32 %v215, 0.0
  %v246 = vmax.f32 %v220, 0.0
  %v247 = vmax.f32 %v225, 0.0
  %v248 = vmax.f32 %v230, 0.0
  %vm249 = vcmask 392192
  %250 = vst.msk [vmem:[%s3] sm:$0xff] %vm249, %v233
  %251 = vst.msk [vmem:[%s3 + $0x8] sm:$0xff] %vm249, %v234
  %252 = vst.msk [vmem:[%s3 + $0x10] sm:$0xff] %vm249, %v235
  %253 = vst.msk [vmem:[%s3 + $0x18] sm:$0xff] %vm249, %v236
  %254 = vst.msk [vmem:[%s3 + $0x20] sm:$0xff] %vm249, %v237
  %255 = vst.msk [vmem:[%s3 + $0x28] sm:$0xff] %vm249, %v238
  %256 = vst.msk [vmem:[%s3 + $0x30] sm:$0xff] %vm249, %v239
  %257 = vst.msk [vmem:[%s3 + $0x38] sm:$0xff] %vm249, %v240
  %258 = vst.msk [vmem:[%s3 + $0x40] sm:$0xff] %vm249, %v241
  %259 = vst.msk [vmem:[%s3 + $0x48] sm:$0xff] %vm249, %v242
  %260 = vst.msk [vmem:[%s3 + $0x50] sm:$0xff] %vm249, %v243
  %261 = vst.msk [vmem:[%s3 + $0x58] sm:$0xff] %vm249, %v244
  %262 = vst.msk [vmem:[%s3 + $0x60] sm:$0xff] %vm249, %v245
  %263 = vst.msk [vmem:[%s3 + $0x68] sm:$0xff] %vm249, %v246
  %264 = vst.msk [vmem:[%s3 + $0x70] sm:$0xff] %vm249, %v247
  %265 = vst.msk [vmem:[%s3 + $0x78] sm:$0xff] %vm249, %v248
  // Predicated region
  $region14: #{tpu_custom_call.1} parent=0 // pred_check
    _
  $region15: #{tpu_custom_call.1} parent=0 // pred_check_branch
    %267 = sbr.rel (0) target = $region17
  $region16: #{tpu_custom_call.1} parent=0 // pred_region
    _
  $region17: #{tpu_custom_call.1} parent=0 // pred_fallthru
    _
  // Predicated region
  $region18: #{tpu_custom_call.1} parent=0 // pred_check
    _
  $region19: #{tpu_custom_call.1} parent=0 // pred_check_branch
    %269 = sbr.rel (0) target = $region21
  $region20: #{tpu_custom_call.1} parent=0 // pred_region
    _
  $region21: #{tpu_custom_call.1} parent=0 // pred_fallthru
    _

</llo_original>
